<compile_context>
chip_gen: v6e
topology: v6e:2x2x1
jax: 0.10.0
libtpu: 0.0.40
codegen_flags: <defaults>
</compile_context>

<pallas_src>
import jax
import jax.numpy as jnp
from jax.experimental import pallas as pl
from jax.experimental.pallas import tpu as pltpu

ALPHA = 0.2                      # negative_slope default from the PyTorch module
C1 = (1.0 + ALPHA) * 0.5         # constants folded at trace time
C2 = (1.0 - ALPHA) * 0.5

LANE = 128
MIN_PALLAS_BYTES = 256 * 1024    # below this, XLA fusion wins (kernel-dispatch cost dominates)


def _round_up(x, m):
    return ((x + m - 1) // m) * m


def _chip_profile():
    """Return (block_bytes, num_tensorcores) tuned per TPU generation.

    Defaults are v5e-safe (2 MiB blocks -> 4 buffers x 2 MiB = 8 MiB, leaving
    headroom under v5e's 16 MiB scoped-VMEM default); no vmem_limit override
    is needed on any generation with these sizes.
    """
    block_bytes, num_tc = 2 * 1024 * 1024, 1
    try:
        kind = jax.devices()[0].device_kind.lower()
    except Exception:
        return block_bytes, num_tc
    if "v7" in kind:
        block_bytes, num_tc = 4 * 1024 * 1024, 2   # 16 MiB of buffers < 32 MiB scoped default
    elif "v6" in kind:
        block_bytes = 4 * 1024 * 1024               # ~roofline on v6e, same headroom
    return block_bytes, num_tc


def _smooth_leaky_relu_kernel(x_ref, o_ref):
    # Compute in f32 (v5e VPU/EUP have no bf16); tanh runs on the EUP slot so
    # compute stays fully hidden under the HBM DMA. Cast back on store so HBM
    # traffic stays at the input dtype width.
    x = x_ref[...].astype(jnp.float32)
    o_ref[...] = (x * (C1 + C2 * jnp.tanh(0.5 * x))).astype(o_ref.dtype)


def _smooth_leaky_relu_jnp(x):
    # Fused-XLA fallback (tiny or non-128-aligned inputs). Same math as kernel.
    xf = x.astype(jnp.float32)
    return (xf * (C1 + C2 * jnp.tanh(0.5 * xf))).astype(x.dtype)


def smooth_leaky_relu(x, *, min_pallas_bytes=MIN_PALLAS_BYTES):
    """Elementwise SmoothLeakyReLU for any shape / float dtype (NCHW in tests)."""
    orig_shape = x.shape
    dtype = x.dtype
    n = x.size
    itemsize = jnp.dtype(dtype).itemsize

    # Tiny tensors: pallas_call fixed cost + plumbing dominates. Non-128-aligned
    # totals: a pad + slice would each be an extra full-array HBM pass (~3x
    # traffic). XLA's fused elementwise expression is at roofline for both.
    if n == 0 or n % LANE != 0 or n * itemsize < min_pallas_bytes:
        return _smooth_leaky_relu_jnp(x)

    block_bytes, num_tc = _chip_profile()
    # Sub-32-bit dtypes pack along sublanes: 8 rows for f32, 16 for bf16/f16.
    sub_mult = 8 * max(1, 4 // itemsize)
    rows = n // LANE
    x2d = x.reshape(rows, LANE)              # zero-copy for contiguous arrays

    # Large blocks amortize the ~0.35 us per-grid-step overhead; a ragged last
    # block (rows % tile_rows != 0) is fine — Pallas masks its OOB writes.
    max_tile_rows = max(
        sub_mult,
        (block_bytes // (LANE * itemsize)) // sub_mult * sub_mult,
    )
    if rows > max_tile_rows:
        tile_rows = max_tile_rows
    elif num_tc >= 2 and rows > sub_mult:
        # Only on 2-TC chips (v7x): split into >=2 blocks so both cores get work.
        tile_rows = min(_round_up(pl.cdiv(rows, num_tc), sub_mult), rows)
    else:
        # Single-TC chips: one full-extent block — extra grid steps would be
        # pure serial overhead with zero parallelism gain.
        tile_rows = rows
    grid = (pl.cdiv(rows, tile_rows),)

    out2d = pl.pallas_call(
        _smooth_leaky_relu_kernel,
        out_shape=jax.ShapeDtypeStruct((rows, LANE), dtype),
        grid_spec=pltpu.PrefetchScalarGridSpec(
            num_scalar_prefetch=0,
            grid=grid,
            in_specs=[pl.BlockSpec((tile_rows, LANE), lambda i: (i, 0))],
            out_specs=pl.BlockSpec((tile_rows, LANE), lambda i: (i, 0)),
        ),
        compiler_params=pltpu.CompilerParams(
            dimension_semantics=("parallel",),   # row axis shards across TCs on v7x
        ),
    )(x2d)
    return out2d.reshape(orig_shape)


def smooth_leaky_relu_ref(x):
    # Literal transcription of the PyTorch module's forward.
    x1 = (1.0 + ALPHA) / 2.0 * x
    x2 = (1.0 - ALPHA) / 2.0 * x * (2.0 * jax.nn.sigmoid(x) - 1.0)
    return x1 + x2


if __name__ == "__main__":
    key = jax.random.PRNGKey(0)

    # Module-consistent NCHW input. Force the Pallas path (min_pallas_bytes=0)
    # so the kernel itself is exercised and verified at this shape.
    x = jax.random.normal(key, (2, 4, 16, 16), dtype=jnp.float32)
    out = jax.block_until_ready(smooth_leaky_relu(x, min_pallas_bytes=0))
    ref = smooth_leaky_relu_ref(x)
    assert out.shape == x.shape and out.dtype == x.dtype
    assert jnp.allclose(out, ref, atol=1e-5, rtol=1e-5)

    # Default wrapper on the same tiny input takes the fused-XLA fast path.
    out_small = jax.block_until_ready(smooth_leaky_relu(x))
    assert jnp.allclose(out_small, ref, atol=1e-5, rtol=1e-5)

    # Larger lane-aligned input: exercises the multi-block pipelined Pallas path.
    xb = jax.random.normal(jax.random.PRNGKey(1), (8, 16, 64, 128), dtype=jnp.float32)
    outb = jax.block_until_ready(smooth_leaky_relu(xb))
    assert jnp.allclose(outb, smooth_leaky_relu_ref(xb), atol=1e-5, rtol=1e-5)

    # Non-lane-aligned size: takes the fallback (no pad/slice HBM passes).
    x2 = jax.random.normal(jax.random.PRNGKey(2), (3, 5, 7, 11), dtype=jnp.float32)
    out2 = jax.block_until_ready(smooth_leaky_relu(x2))
    assert jnp.allclose(out2, smooth_leaky_relu_ref(x2), atol=1e-5, rtol=1e-5)

    print("KERNEL_OK")
</pallas_src>

<mosaic_0001>
module attributes {stable_mosaic.version = 11 : i64} {
  func.func @_smooth_leaky_relu_kernel(%arg0: i32, %arg1: memref<16x128xf32, #tpu.memory_space<vmem>>, %arg2: memref<16x128xf32, #tpu.memory_space<vmem>>) attributes {dimension_semantics = [#tpu.dimension_semantics<parallel>], iteration_bounds = array<i64: 1>, scalar_prefetch = 0 : i64, scratch_operands = 0 : i64, tpu.core_type = #tpu.core_type<tc>, window_params = [{transform_indices = @transform_0, window_bounds = array<i64: 16, 128>}, {transform_indices = @transform_1, window_bounds = array<i64: 16, 128>}]} {
    %c0 = arith.constant 0 : index
    %c0_0 = arith.constant 0 : index
    %0 = vector.load %arg1[%c0, %c0_0] : memref<16x128xf32, #tpu.memory_space<vmem>>, vector<16x128xf32>
    %cst = arith.constant 5.000000e-01 : f32
    %1 = vector.broadcast %cst : f32 to vector<16x128xf32>
    %2 = arith.mulf %1, %0 : vector<16x128xf32>
    %3 = math.tanh %2 : vector<16x128xf32>
    %cst_1 = arith.constant 4.000000e-01 : f32
    %4 = vector.broadcast %cst_1 : f32 to vector<16x128xf32>
    %5 = arith.mulf %4, %3 : vector<16x128xf32>
    %cst_2 = arith.constant 6.000000e-01 : f32
    %6 = vector.broadcast %cst_2 : f32 to vector<16x128xf32>
    %7 = arith.addf %6, %5 : vector<16x128xf32>
    %8 = arith.mulf %0, %7 : vector<16x128xf32>
    %c0_3 = arith.constant 0 : index
    %c0_4 = arith.constant 0 : index
    %9 = vector.load %arg2[%c0_3, %c0_4] : memref<16x128xf32, #tpu.memory_space<vmem>>, vector<16x128xf32>
    tpu.vector_store %arg2[%c0_3, %c0_4], %8 {strides = array<i32>} : memref<16x128xf32, #tpu.memory_space<vmem>>, vector<16x128xf32>,
    return
  }
  func.func @transform_0(%arg0: i32) -> (i32, i32) {
    %c0_i32 = arith.constant 0 : i32
    %c0_i32_0 = arith.constant 0 : i32
    return %arg0, %c0_i32 : i32, i32
  }
  func.func @transform_1(%arg0: i32) -> (i32, i32) {
    %c0_i32 = arith.constant 0 : i32
    %c0_i32_0 = arith.constant 0 : i32
    return %arg0, %c0_i32 : i32, i32
  }
}

</mosaic_0001>

<llo_original>
// kernel: tpu_custom_call.1
$region0: #{tpu_custom_call.1}
  #allocation0 [shape = 'u32[]', space=smem, size = 0x4, offset = 0x4, fixed_abs, tag = 'smem constant byte address 0x4 - core index']
  #allocation1 [shape = 'u32[144,128]{1,0:T(1,128)}', space=vmem, size = 0x12000, scoped, tag = 'internal scratch']
  %s0 = inlined_call_operand.hbm [shape: f32[16,128], index: 0, kind: input, shape index: {}]
  %s1 = inlined_call_operand.hbm [shape: f32[16,128], index: 1, kind: output, shape index: {}]
  %s2 = sld [smem:[#allocation0]]
  $region18: #{tpu_custom_call.1} parent=0
    _
  %s4 = ssub.s32 1, %s2
  %s5 = scalar_select 0, %s4, %s2
  $region1: #{tpu_custom_call.1} parent=0
    #allocation2 [shape = 'u8[8192]{0}', space=vmem, size = 0x2000, scoped, tag = 'input window, operand 0, single buffered']
    #allocation3 [shape = 's32[1]{0}', space=sflag, size = 0x4, scoped, tag = 'scoped memory for tpu_custom_call.1']
    #allocation4 [shape = 's32[1]{0}', space=sflag, size = 0x4, scoped, tag = 'scoped memory for tpu_custom_call.1']
    #allocation5 [shape = 'u8[8192]{0}', space=vmem, size = 0x2000, scoped, tag = 'output window, operand 0, single buffered']
    %6 = vsyncpa [#allocation3], 0
    %7 = vsyncpa [#allocation4], 0
    // Predicated region
    $region2: #{tpu_custom_call.1} parent=1 // pred_check
      _
    $region3: #{tpu_custom_call.1} parent=1 // pred_check_branch
      %9 = sbr.rel (0) target = $region5
    $region4: #{tpu_custom_call.1} parent=1 // pred_region
      %s11 = ssub.s32 256, 256
      %12 = vsyncadd [#allocation3], %s11
      %s13 = sshll.u32 [#allocation2], 4
      %s14 = int_to_ptr.vmem [resolvable:$true] %s13
      %19 = dma.hbm_to_vmem [thread:$0]  %s0, 256, %s14, [#allocation3], 128, 128, 8
    $region5: #{tpu_custom_call.1} parent=1 // pred_fallthru
      _
    // Predicated region
    $region6: #{tpu_custom_call.1} parent=1 // pred_check
      _
    $region7: #{tpu_custom_call.1} parent=1 // pred_check_branch
      %21 = sbr.rel (0) target = $region9
    $region8: #{tpu_custom_call.1} parent=1 // pred_region
      %22 = dma.done [#allocation3], 256
    $region9: #{tpu_custom_call.1} parent=1 // pred_fallthru
      _
    %v23 = vld [vmem:[#allocation2] sm:$0xff]
    %v24 = vld [vmem:[#allocation2 + $0x8] sm:$0xff]
    %v25 = vmul.f32 %v23, 0.5
    %v26 = vmul.f32 %v24, 0.5
    %v27 = vtanh.pop %v25
    %v28 = vtanh.pop %v26
    %v29 = vmul.f32 %v27, 0.4
    %v30 = vmul.f32 %v28, 0.4
    %v31 = vadd.f32 %v29, 0.6
    %v32 = vadd.f32 %v30, 0.6
    %v33 = vmul.f32 %v23, %v31
    %v34 = vmul.f32 %v24, %v32
    %35 = vst [vmem:[#allocation5] sm:$0xff] %v33
    %36 = vst [vmem:[#allocation5 + $0x8] sm:$0xff] %v34
    // Predicated region
    $region10: #{tpu_custom_call.1} parent=1 // pred_check
      _
    $region11: #{tpu_custom_call.1} parent=1 // pred_check_branch
      %38 = sbr.rel (0) target = $region13
    $region12: #{tpu_custom_call.1} parent=1 // pred_region
      %s40 = ssub.s32 256, 256
      %41 = vsyncadd [#allocation4], %s40
      %s42 = sshll.u32 [#allocation5], 4
      %s43 = int_to_ptr.vmem [resolvable:$true] %s42
      %48 = dma.vmem_to_hbm [thread:$0]  %s43, 256, %s1, [#allocation4], 128, 128, 8
    $region13: #{tpu_custom_call.1} parent=1 // pred_fallthru
      _
    // Predicated region
    $region14: #{tpu_custom_call.1} parent=1 // pred_check
      _
    $region15: #{tpu_custom_call.1} parent=1 // pred_check_branch
      %50 = sbr.rel (0) target = $region17
    $region16: #{tpu_custom_call.1} parent=1 // pred_region
      %51 = dma.done [#allocation4], 256
    $region17: #{tpu_custom_call.1} parent=1 // pred_fallthru
      _
    %52 = vsyncpa [#allocation3], 1
    %53 = vsyncpa [#allocation4], 1

</llo_original>
